<compile_context>
chip_gen: v6e
topology: v6e:2x2x1
jax: 0.10.0
libtpu: 0.0.40
codegen_flags: <defaults>
</compile_context>

<pallas_src>
import functools

import jax
import jax.numpy as jnp
from jax.experimental import pallas as pl
from jax.experimental.pallas import tpu as pltpu

INPUT_SIZE = 32
HIDDEN_SIZE = 32
DROPOUT_RATE = 0.5


def _prenet_body(x_ref, w1_ref, b1_ref, w2_ref, b2_ref, o_ref, m1_ref, m2_ref):
    # fc1 + ReLU  (MXU matmul, f32 accumulate; bias broadcasts over rows)
    h = jnp.dot(x_ref[...], w1_ref[...],
                preferred_element_type=jnp.float32) + b1_ref[...]
    h = jnp.maximum(h, 0.0)
    if m1_ref is not None:               # pre-scaled inverted-dropout mask
        h = h * m1_ref[...]

    # fc2 + ReLU
    h = jnp.dot(h, w2_ref[...],
                preferred_element_type=jnp.float32) + b2_ref[...]
    h = jnp.maximum(h, 0.0)
    if m2_ref is not None:
        h = h * m2_ref[...]

    o_ref[...] = h.astype(o_ref.dtype)


def _prenet_kernel_train(x_ref, w1_ref, b1_ref, w2_ref, b2_ref,
                         m1_ref, m2_ref, o_ref):
    _prenet_body(x_ref, w1_ref, b1_ref, w2_ref, b2_ref, o_ref, m1_ref, m2_ref)


def _prenet_kernel_eval(x_ref, w1_ref, b1_ref, w2_ref, b2_ref, o_ref):
    _prenet_body(x_ref, w1_ref, b1_ref, w2_ref, b2_ref, o_ref, None, None)


def prenet_forward(params, x, key=None, *, dropout_rate=DROPOUT_RATE,
                   training=True, block_rows=512):
    """PreNet forward. x: [..., input_size] -> [..., hidden_size]."""
    w1, b1, w2, b2 = params
    in_size = w1.shape[0]
    hidden = w2.shape[1]

    lead_shape = x.shape[:-1]
    x2 = x.reshape(-1, in_size).astype(jnp.float32)   # flatten B*T rows
    n_rows = x2.shape[0]

    apply_dropout = bool(training) and dropout_rate > 0.0
    keep_prob = 1.0 - dropout_rate

    # Row tile: multiple of 8 (f32 sublane), capped at block_rows.
    bm = min(block_rows, max(8, ((n_rows + 7) // 8) * 8))
    n_pad = ((n_rows + bm - 1) // bm) * bm
    if n_pad != n_rows:
        x2 = jnp.pad(x2, ((0, n_pad - n_rows), (0, 0)))
    grid = (n_pad // bm,)

    row_spec = pl.BlockSpec((bm, in_size), lambda i: (i, 0))
    h_spec = pl.BlockSpec((bm, hidden), lambda i: (i, 0))
    # Weights / biases: full-array blocks, constant index -> stay VMEM-resident.
    w1_spec = pl.BlockSpec(w1.shape, lambda i: (0, 0))
    b1_spec = pl.BlockSpec(b1.shape, lambda i: (0, 0))
    w2_spec = pl.BlockSpec(w2.shape, lambda i: (0, 0))
    b2_spec = pl.BlockSpec(b2.shape, lambda i: (0, 0))

    in_specs = [row_spec, w1_spec, b1_spec, w2_spec, b2_spec]
    args = [x2, w1, b1, w2, b2]

    if apply_dropout:
        # TODO(synk): PyTorch's RNG stream cannot be reproduced bit-exactly;
        # masks are drawn with jax.random (same Bernoulli(keep_prob) + 1/keep
        # scaling).  Each grid tile sees its own mask slice.
        if key is None:
            raise ValueError("training dropout requires a PRNG key")
        k1, k2 = jax.random.split(key)
        scale = 1.0 / keep_prob
        m1 = (jax.random.uniform(k1, (n_pad, hidden)) < keep_prob
              ).astype(jnp.float32) * scale
        m2 = (jax.random.uniform(k2, (n_pad, hidden)) < keep_prob
              ).astype(jnp.float32) * scale
        in_specs += [h_spec, h_spec]
        args += [m1, m2]
        kernel = _prenet_kernel_train
    else:
        kernel = _prenet_kernel_eval

    out = pl.pallas_call(
        kernel,
        out_shape=jax.ShapeDtypeStruct((n_pad, hidden), jnp.float32),
        grid=grid,
        in_specs=in_specs,
        out_specs=h_spec,
        compiler_params=pltpu.CompilerParams(
            dimension_semantics=("parallel",)),   # shard rows over v7x's 2 TCs
    )(*args)

    out = out[:n_rows]
    return out.reshape(lead_shape + (hidden,))


def init_params(key, input_size, hidden_size):
    """Deterministic init matching nn.Linear default: U(-1/sqrt(fan_in), +)."""
    k1, k2, k3, k4 = jax.random.split(key, 4)
    bound1 = 1.0 / (input_size ** 0.5)
    bound2 = 1.0 / (hidden_size ** 0.5)
    # stored as [in, out] (transposed relative to PyTorch's [out, in])
    w1 = jax.random.uniform(k1, (input_size, hidden_size), jnp.float32,
                            -bound1, bound1)
    b1 = jax.random.uniform(k2, (1, hidden_size), jnp.float32, -bound1, bound1)
    w2 = jax.random.uniform(k3, (hidden_size, hidden_size), jnp.float32,
                            -bound2, bound2)
    b2 = jax.random.uniform(k4, (1, hidden_size), jnp.float32, -bound2, bound2)
    return (w1, b1, w2, b2)


if __name__ == "__main__":
    key = jax.random.PRNGKey(0)
    pkey, xkey, dkey = jax.random.split(key, 3)

    params = init_params(pkey, INPUT_SIZE, HIDDEN_SIZE)

    # [B, T, input_size]: leading dims are flattened to B*T rows inside the
    # wrapper so the whole batch of steps goes through one pallas_call.
    B, T = 2, 8
    x = jax.random.normal(xkey, (B, T, INPUT_SIZE), jnp.float32)

    # training path (dropout active)
    out_train = jax.block_until_ready(
        prenet_forward(params, x, dkey, dropout_rate=DROPOUT_RATE,
                       training=True))
    assert out_train.shape == (B, T, HIDDEN_SIZE)
    assert bool(jnp.all(out_train >= 0.0))          # ReLU (+ scaling) >= 0

    # eval path (deterministic) vs. pure-JAX reference
    out_eval = jax.block_until_ready(
        prenet_forward(params, x, training=False))
    w1, b1, w2, b2 = params
    xf = x.reshape(-1, INPUT_SIZE)
    ref = jnp.maximum(jnp.maximum(xf @ w1 + b1, 0.0) @ w2 + b2, 0.0)
    ref = ref.reshape(B, T, HIDDEN_SIZE)
    assert out_eval.shape == ref.shape
    assert jnp.allclose(out_eval, ref, atol=1e-5, rtol=1e-5)

    print("KERNEL_OK")
</pallas_src>

<mosaic_0001>
module attributes {stable_mosaic.version = 11 : i64} {
  func.func @_prenet_kernel_train(%arg0: i32, %arg1: memref<16x32xf32, #tpu.memory_space<vmem>>, %arg2: memref<32x32xf32, #tpu.memory_space<vmem>>, %arg3: memref<1x32xf32, #tpu.memory_space<vmem>>, %arg4: memref<32x32xf32, #tpu.memory_space<vmem>>, %arg5: memref<1x32xf32, #tpu.memory_space<vmem>>, %arg6: memref<16x32xf32, #tpu.memory_space<vmem>>, %arg7: memref<16x32xf32, #tpu.memory_space<vmem>>, %arg8: memref<16x32xf32, #tpu.memory_space<vmem>>) attributes {dimension_semantics = [#tpu.dimension_semantics<parallel>], iteration_bounds = array<i64: 1>, scalar_prefetch = 0 : i64, scratch_operands = 0 : i64, tpu.core_type = #tpu.core_type<tc>, window_params = [{transform_indices = @transform_0, window_bounds = array<i64: 16, 32>}, {pipeline_mode = #tpu.pipeline_mode<synchronous>, transform_indices = @transform_1, window_bounds = array<i64: 32, 32>}, {pipeline_mode = #tpu.pipeline_mode<synchronous>, transform_indices = @transform_2, window_bounds = array<i64: 1, 32>}, {pipeline_mode = #tpu.pipeline_mode<synchronous>, transform_indices = @transform_3, window_bounds = array<i64: 32, 32>}, {pipeline_mode = #tpu.pipeline_mode<synchronous>, transform_indices = @transform_4, window_bounds = array<i64: 1, 32>}, {transform_indices = @transform_5, window_bounds = array<i64: 16, 32>}, {transform_indices = @transform_6, window_bounds = array<i64: 16, 32>}, {transform_indices = @transform_7, window_bounds = array<i64: 16, 32>}]} {
    %c0 = arith.constant 0 : index
    %c0_0 = arith.constant 0 : index
    %0 = vector.load %arg1[%c0, %c0_0] : memref<16x32xf32, #tpu.memory_space<vmem>>, vector<16x32xf32>
    %c0_1 = arith.constant 0 : index
    %c0_2 = arith.constant 0 : index
    %1 = vector.load %arg2[%c0_1, %c0_2] : memref<32x32xf32, #tpu.memory_space<vmem>>, vector<32x32xf32>
    %cst = arith.constant dense<0.000000e+00> : vector<16x32xf32>
    %2 = tpu.matmul %0, %1, %cst {dimension_numbers = #tpu.dot_dimension_numbers<[1], [0], [0], [1], [0, 0, 1, 1], [], []>} : vector<16x32xf32>, vector<32x32xf32>, vector<16x32xf32> -> vector<16x32xf32>
    %c0_3 = arith.constant 0 : index
    %c0_4 = arith.constant 0 : index
    %3 = vector.load %arg3[%c0_3, %c0_4] : memref<1x32xf32, #tpu.memory_space<vmem>>, vector<1x32xf32>
    %4 = vector.broadcast %3 : vector<1x32xf32> to vector<16x32xf32>
    %5 = arith.addf %2, %4 : vector<16x32xf32>
    %cst_5 = arith.constant 0.000000e+00 : f32
    %6 = vector.broadcast %cst_5 : f32 to vector<16x32xf32>
    %7 = arith.maximumf %5, %6 : vector<16x32xf32>
    %c0_6 = arith.constant 0 : index
    %c0_7 = arith.constant 0 : index
    %8 = vector.load %arg6[%c0_6, %c0_7] : memref<16x32xf32, #tpu.memory_space<vmem>>, vector<16x32xf32>
    %9 = arith.mulf %7, %8 : vector<16x32xf32>
    %c0_8 = arith.constant 0 : index
    %c0_9 = arith.constant 0 : index
    %10 = vector.load %arg4[%c0_8, %c0_9] : memref<32x32xf32, #tpu.memory_space<vmem>>, vector<32x32xf32>
    %cst_10 = arith.constant dense<0.000000e+00> : vector<16x32xf32>
    %11 = tpu.matmul %9, %10, %cst_10 {dimension_numbers = #tpu.dot_dimension_numbers<[1], [0], [0], [1], [0, 0, 1, 1], [], []>} : vector<16x32xf32>, vector<32x32xf32>, vector<16x32xf32> -> vector<16x32xf32>
    %c0_11 = arith.constant 0 : index
    %c0_12 = arith.constant 0 : index
    %12 = vector.load %arg5[%c0_11, %c0_12] : memref<1x32xf32, #tpu.memory_space<vmem>>, vector<1x32xf32>
    %13 = vector.broadcast %12 : vector<1x32xf32> to vector<16x32xf32>
    %14 = arith.addf %11, %13 : vector<16x32xf32>
    %cst_13 = arith.constant 0.000000e+00 : f32
    %15 = vector.broadcast %cst_13 : f32 to vector<16x32xf32>
    %16 = arith.maximumf %14, %15 : vector<16x32xf32>
    %c0_14 = arith.constant 0 : index
    %c0_15 = arith.constant 0 : index
    %17 = vector.load %arg7[%c0_14, %c0_15] : memref<16x32xf32, #tpu.memory_space<vmem>>, vector<16x32xf32>
    %18 = arith.mulf %16, %17 : vector<16x32xf32>
    %c0_16 = arith.constant 0 : index
    %c0_17 = arith.constant 0 : index
    %19 = vector.load %arg8[%c0_16, %c0_17] : memref<16x32xf32, #tpu.memory_space<vmem>>, vector<16x32xf32>
    tpu.vector_store %arg8[%c0_16, %c0_17], %18 {strides = array<i32>} : memref<16x32xf32, #tpu.memory_space<vmem>>, vector<16x32xf32>,
    return
  }
  func.func @transform_0(%arg0: i32) -> (i32, i32) {
    %c0_i32 = arith.constant 0 : i32
    %c0_i32_0 = arith.constant 0 : i32
    return %arg0, %c0_i32 : i32, i32
  }
  func.func @transform_1(%arg0: i32) -> (i32, i32) {
    %c0_i32 = arith.constant 0 : i32
    %c0_i32_0 = arith.constant 0 : i32
    %c0_i32_1 = arith.constant 0 : i32
    return %c0_i32, %c0_i32_0 : i32, i32
  }
  func.func @transform_2(%arg0: i32) -> (i32, i32) {
    %c0_i32 = arith.constant 0 : i32
    %c0_i32_0 = arith.constant 0 : i32
    %c0_i32_1 = arith.constant 0 : i32
    return %c0_i32, %c0_i32_0 : i32, i32
  }
  func.func @transform_3(%arg0: i32) -> (i32, i32) {
    %c0_i32 = arith.constant 0 : i32
    %c0_i32_0 = arith.constant 0 : i32
    %c0_i32_1 = arith.constant 0 : i32
    return %c0_i32, %c0_i32_0 : i32, i32
  }
  func.func @transform_4(%arg0: i32) -> (i32, i32) {
    %c0_i32 = arith.constant 0 : i32
    %c0_i32_0 = arith.constant 0 : i32
    %c0_i32_1 = arith.constant 0 : i32
    return %c0_i32, %c0_i32_0 : i32, i32
  }
  func.func @transform_5(%arg0: i32) -> (i32, i32) {
    %c0_i32 = arith.constant 0 : i32
    %c0_i32_0 = arith.constant 0 : i32
    return %arg0, %c0_i32 : i32, i32
  }
  func.func @transform_6(%arg0: i32) -> (i32, i32) {
    %c0_i32 = arith.constant 0 : i32
    %c0_i32_0 = arith.constant 0 : i32
    return %arg0, %c0_i32 : i32, i32
  }
  func.func @transform_7(%arg0: i32) -> (i32, i32) {
    %c0_i32 = arith.constant 0 : i32
    %c0_i32_0 = arith.constant 0 : i32
    return %arg0, %c0_i32 : i32, i32
  }
}

</mosaic_0001>

<llo_original>
// kernel: tpu_custom_call.1
$region0: #{tpu_custom_call.1}
  #allocation0 [shape = 'u32[]', space=smem, size = 0x4, offset = 0x4, fixed_abs, tag = 'smem constant byte address 0x4 - core index']
  #allocation1 [shape = 'u32[144,128]{1,0:T(1,128)}', space=vmem, size = 0x12000, scoped, tag = 'internal scratch']
  %s0 = inlined_call_operand.hbm [shape: f32[16,32], index: 0, kind: input, shape index: {}]
  %s1 = inlined_call_operand.hbm [shape: f32[32,32], index: 1, kind: input, shape index: {}]
  %s2 = inlined_call_operand.vmem [shape: f32[1,32], index: 2, kind: input, shape index: {}]
  %s3 = inlined_call_operand.hbm [shape: f32[32,32], index: 3, kind: input, shape index: {}]
  %s4 = inlined_call_operand.vmem [shape: f32[1,32], index: 4, kind: input, shape index: {}]
  %s5 = inlined_call_operand.hbm [shape: f32[16,32], index: 5, kind: input, shape index: {}]
  %s6 = inlined_call_operand.hbm [shape: f32[16,32], index: 6, kind: input, shape index: {}]
  %s7 = inlined_call_operand.hbm [shape: f32[16,32], index: 7, kind: output, shape index: {}]
  %s8 = sld [smem:[#allocation0]]
  $region58: #{tpu_custom_call.1} parent=0
    _
  %s10 = ssub.s32 1, %s8
  %s11 = scalar_select 0, %s10, %s8
  $region1: #{tpu_custom_call.1} parent=0
    #allocation2 [shape = 'u8[8192]{0}', space=vmem, size = 0x2000, scoped, tag = 'input window, operand 0, single buffered']
    #allocation3 [shape = 's32[1]{0}', space=sflag, size = 0x4, scoped, tag = 'scoped memory for tpu_custom_call.1']
    #allocation4 [shape = 's32[1]{0}', space=sflag, size = 0x4, scoped, tag = 'scoped memory for tpu_custom_call.1']
    #allocation5 [shape = 'u8[16384]{0}', space=vmem, size = 0x4000, scoped, tag = 'input window, operand 1, single buffered']
    #allocation6 [shape = 's32[1]{0}', space=sflag, size = 0x4, scoped, tag = 'scoped memory for tpu_custom_call.1']
    #allocation7 [shape = 'u8[16384]{0}', space=vmem, size = 0x4000, scoped, tag = 'input window, operand 3, single buffered']
    #allocation8 [shape = 'u8[8192]{0}', space=vmem, size = 0x2000, scoped, tag = 'input window, operand 5, single buffered']
    #allocation9 [shape = 's32[1]{0}', space=sflag, size = 0x4, scoped, tag = 'scoped memory for tpu_custom_call.1']
    #allocation10 [shape = 'u8[8192]{0}', space=vmem, size = 0x2000, scoped, tag = 'input window, operand 6, single buffered']
    #allocation11 [shape = 'u8[8192]{0}', space=vmem, size = 0x2000, scoped, tag = 'output window, operand 0, single buffered']
    %12 = vsyncpa [#allocation3], 0
    %13 = vsyncpa [#allocation6], 0
    %14 = vsyncpa [#allocation9], 0
    %15 = vsyncpa [#allocation4], 0
    // Predicated region
    $region2: #{tpu_custom_call.1} parent=1 // pred_check
      _
    $region3: #{tpu_custom_call.1} parent=1 // pred_check_branch
      %17 = sbr.rel (0) target = $region5
    $region4: #{tpu_custom_call.1} parent=1 // pred_region
      %s19 = ssub.s32 256, 256
      %20 = vsyncadd [#allocation3], %s19
      %s21 = sshll.u32 [#allocation2], 4
      %s22 = int_to_ptr.vmem [resolvable:$true] %s21
      %27 = dma.hbm_to_vmem [thread:$0]  %s0, 256, %s22, [#allocation3], 128, 128, 8
    $region5: #{tpu_custom_call.1} parent=1 // pred_fallthru
      _
    // Predicated region
    $region6: #{tpu_custom_call.1} parent=1 // pred_check
      _
    $region7: #{tpu_custom_call.1} parent=1 // pred_check_branch
      %29 = sbr.rel (0) target = $region9
    $region8: #{tpu_custom_call.1} parent=1 // pred_region
      %s31 = ssub.s32 512, 512
      %32 = vsyncadd [#allocation6], %s31
      %s33 = sshll.u32 [#allocation5], 4
      %s34 = int_to_ptr.vmem [resolvable:$true] %s33
      %39 = dma.hbm_to_vmem [thread:$0]  %s1, 512, %s34, [#allocation6], 128, 128, 8
    $region9: #{tpu_custom_call.1} parent=1 // pred_fallthru
      _
    // Predicated region
    $region10: #{tpu_custom_call.1} parent=1 // pred_check
      _
    $region11: #{tpu_custom_call.1} parent=1 // pred_check_branch
      %41 = sbr.rel (0) target = $region13
    $region12: #{tpu_custom_call.1} parent=1 // pred_region
      _
    $region13: #{tpu_custom_call.1} parent=1 // pred_fallthru
      _
    // Predicated region
    $region14: #{tpu_custom_call.1} parent=1 // pred_check
      _
    $region15: #{tpu_custom_call.1} parent=1 // pred_check_branch
      %43 = sbr.rel (0) target = $region17
    $region16: #{tpu_custom_call.1} parent=1 // pred_region
      %s45 = ssub.s32 512, 512
      %46 = vsyncadd [#allocation6], %s45
      %s47 = sshll.u32 [#allocation7], 4
      %s48 = int_to_ptr.vmem [resolvable:$true] %s47
      %53 = dma.hbm_to_vmem [thread:$0]  %s3, 512, %s48, [#allocation6], 128, 128, 8
    $region17: #{tpu_custom_call.1} parent=1 // pred_fallthru
      _
    // Predicated region
    $region18: #{tpu_custom_call.1} parent=1 // pred_check
      _
    $region19: #{tpu_custom_call.1} parent=1 // pred_check_branch
      %55 = sbr.rel (0) target = $region21
    $region20: #{tpu_custom_call.1} parent=1 // pred_region
      _
    $region21: #{tpu_custom_call.1} parent=1 // pred_fallthru
      _
    // Predicated region
    $region22: #{tpu_custom_call.1} parent=1 // pred_check
      _
    $region23: #{tpu_custom_call.1} parent=1 // pred_check_branch
      %57 = sbr.rel (0) target = $region25
    $region24: #{tpu_custom_call.1} parent=1 // pred_region
      %s59 = ssub.s32 256, 256
      %60 = vsyncadd [#allocation9], %s59
      %s61 = sshll.u32 [#allocation8], 4
      %s62 = int_to_ptr.vmem [resolvable:$true] %s61
      %67 = dma.hbm_to_vmem [thread:$0]  %s5, 256, %s62, [#allocation9], 128, 128, 8
    $region25: #{tpu_custom_call.1} parent=1 // pred_fallthru
      _
    // Predicated region
    $region26: #{tpu_custom_call.1} parent=1 // pred_check
      _
    $region27: #{tpu_custom_call.1} parent=1 // pred_check_branch
      %69 = sbr.rel (0) target = $region29
    $region28: #{tpu_custom_call.1} parent=1 // pred_region
      %s71 = ssub.s32 256, 256
      %72 = vsyncadd [#allocation9], %s71
      %s73 = sshll.u32 [#allocation10], 4
      %s74 = int_to_ptr.vmem [resolvable:$true] %s73
      %79 = dma.hbm_to_vmem [thread:$0]  %s6, 256, %s74, [#allocation9], 128, 128, 8
    $region29: #{tpu_custom_call.1} parent=1 // pred_fallthru
      _
    // Predicated region
    $region30: #{tpu_custom_call.1} parent=1 // pred_check
      _
    $region31: #{tpu_custom_call.1} parent=1 // pred_check_branch
      %81 = sbr.rel (0) target = $region33
    $region32: #{tpu_custom_call.1} parent=1 // pred_region
      %82 = dma.done [#allocation3], 256
    $region33: #{tpu_custom_call.1} parent=1 // pred_fallthru
      _
    // Predicated region
    $region34: #{tpu_custom_call.1} parent=1 // pred_check
      _
    $region35: #{tpu_custom_call.1} parent=1 // pred_check_branch
      %84 = sbr.rel (0) target = $region37
    $region36: #{tpu_custom_call.1} parent=1 // pred_region
      %85 = dma.done [#allocation6], 512
    $region37: #{tpu_custom_call.1} parent=1 // pred_fallthru
      _
    // Predicated region
    $region38: #{tpu_custom_call.1} parent=1 // pred_check
      _
    $region39: #{tpu_custom_call.1} parent=1 // pred_check_branch
      %87 = sbr.rel (0) target = $region41
    $region40: #{tpu_custom_call.1} parent=1 // pred_region
      %88 = dma.done [#allocation6], 512
    $region41: #{tpu_custom_call.1} parent=1 // pred_fallthru
      _
    // Predicated region
    $region42: #{tpu_custom_call.1} parent=1 // pred_check
      _
    $region43: #{tpu_custom_call.1} parent=1 // pred_check_branch
      %90 = sbr.rel (0) target = $region45
    $region44: #{tpu_custom_call.1} parent=1 // pred_region
      %91 = dma.done [#allocation9], 256
    $region45: #{tpu_custom_call.1} parent=1 // pred_fallthru
      _
    // Predicated region
    $region46: #{tpu_custom_call.1} parent=1 // pred_check
      _
    $region47: #{tpu_custom_call.1} parent=1 // pred_check_branch
      %93 = sbr.rel (0) target = $region49
    $region48: #{tpu_custom_call.1} parent=1 // pred_region
      %94 = dma.done [#allocation9], 256
    $region49: #{tpu_custom_call.1} parent=1 // pred_fallthru
      _
    %v95 = vld [vmem:[#allocation2] sm:$0xff]
    %v96 = vld [vmem:[#allocation2 + $0x8] sm:$0xff]
    %v97 = vld [vmem:[#allocation5] sm:$0xff]
    %v98 = vld [vmem:[#allocation5 + $0x8] sm:$0xff]
    %v99 = vld [vmem:[#allocation5 + $0x10] sm:$0xff]
    %v100 = vld [vmem:[#allocation5 + $0x18] sm:$0xff]
    %v101 = vld [vmem:[%s2] sm:$0x1]
    %v103 = vlaneseq
    %v104 = vshrl.u32 %v103, 7
    %v105 = vsub.s32 0, %v104
    %v106 = vrot.slane %v101, %v105
    %vm108 = vcmask 261120
    %v110 = vsel %vm108, %v95, 0
    %v113 = vsel %vm108, %v96, 0
    %115 = vmatprep.subr.mxu0 0.0
    %116 = vmatpush1.msra.mxu0 0.0
    %117 = vmatprep.subr.mxu0 0.0
    %118 = vmatpush1.msra.mxu0 0.0
    %119 = vmatprep.subr.mxu0 0.0
    %120 = vmatpush1.msra.mxu0 0.0
    %121 = vmatprep.subr.mxu0 0.0
    %122 = vmatpush1.msra.mxu0 0.0
    %123 = vmatprep.subr.mxu0 0.0
    %124 = vmatpush1.msra.mxu0 0.0
    %125 = vmatprep.subr.mxu0 0.0
    %126 = vmatpush1.msra.mxu0 0.0
    %127 = vmatprep.subr.mxu0 0.0
    %128 = vmatpush1.msra.mxu0 0.0
    %129 = vmatprep.subr.mxu0 0.0
    %130 = vmatpush1.msra.mxu0 0.0
    %131 = vmatprep.subr.mxu0 0.0
    %132 = vmatpush1.msra.mxu0 0.0
    %133 = vmatprep.subr.mxu0 0.0
    %134 = vmatpush1.msra.mxu0 0.0
    %135 = vmatprep.subr.mxu0 0.0
    %136 = vmatpush1.msra.mxu0 0.0
    %137 = vmatprep.subr.mxu0 0.0
    %138 = vmatpush1.msra.mxu0 0.0
    %139 = vmatprep.subr.mxu0 0.0
    %140 = vmatpush1.msra.mxu0 %v100
    %141 = vmatprep.subr.mxu0 0.0
    %142 = vmatpush1.msra.mxu0 %v99
    %143 = vmatprep.subr.mxu0 0.0
    %144 = vmatpush1.msra.mxu0 %v98
    %145 = vmatprep.subr.mxu0 0.0
    %146 = vmatpush1.msra.mxu0 %v97
    %147 = vmatprep.subr.mxu0 0.0
    %148 = vmatpush2.msra.mxu0 0.0
    %149 = vmatprep.subr.mxu0 0.0
    %150 = vmatpush2.msra.mxu0 0.0
    %151 = vmatprep.subr.mxu0 0.0
    %152 = vmatpush2.msra.mxu0 0.0
    %153 = vmatprep.subr.mxu0 0.0
    %154 = vmatpush2.msra.mxu0 0.0
    %155 = vmatprep.subr.mxu0 0.0
    %156 = vmatpush2.msra.mxu0 0.0
    %157 = vmatprep.subr.mxu0 0.0
    %158 = vmatpush2.msra.mxu0 0.0
    %159 = vmatprep.subr.mxu0 0.0
    %160 = vmatpush2.msra.mxu0 0.0
    %161 = vmatprep.subr.mxu0 0.0
    %162 = vmatpush2.msra.mxu0 0.0
    %163 = vmatprep.subr.mxu0 0.0
    %164 = vmatpush2.msra.mxu0 0.0
    %165 = vmatprep.subr.mxu0 0.0
    %166 = vmatpush2.msra.mxu0 0.0
    %167 = vmatprep.subr.mxu0 0.0
    %168 = vmatpush2.msra.mxu0 0.0
    %169 = vmatprep.subr.mxu0 0.0
    %170 = vmatpush2.msra.mxu0 0.0
    %171 = vmatprep.subr.mxu0 0.0
    %172 = vmatpush2.msra.mxu0 0.0
    %173 = vmatprep.subr.mxu0 0.0
    %174 = vmatpush2.msra.mxu0 0.0
    %175 = vmatprep.subr.mxu0 0.0
    %176 = vmatpush2.msra.mxu0 0.0
    %177 = vmatprep.subr.mxu0 0.0
    %178 = vmatpush2.msra.mxu0 0.0
    %179 = vmatprep.mubr.f32.mxu0 0.0
    %180 = vmatmul.mubr.f32.gmra.mxu0 %v110
    %v181 = vpop.f32.mrf.mxu0
    %v182 = vadd.f32 %v106, %v181
    %v183 = vpop.f32.mrf.mxu0
    %184 = vmatprep.mubr.f32.mxu0 0.0
    %185 = vmatmul.mubr.f32.gmra.mxu0 %v113
    %v186 = vpop.f32.mrf.mxu0
    %v187 = vadd.f32 %v106, %v186
    %v188 = vpop.f32.mrf.mxu0
    %189 = vdwg.mxu0
    %v190 = vmax.f32 %v182, 0.0
    %v191 = vmax.f32 %v187, 0.0
    %v192 = vld [vmem:[#allocation8] sm:$0xff]
    %v193 = vld [vmem:[#allocation8 + $0x8] sm:$0xff]
    %v194 = vmul.f32 %v190, %v192
    %v195 = vmul.f32 %v191, %v193
    %v196 = vld [vmem:[#allocation7] sm:$0xff]
    %v197 = vld [vmem:[#allocation7 + $0x8] sm:$0xff]
    %v198 = vld [vmem:[#allocation7 + $0x10] sm:$0xff]
    %v199 = vld [vmem:[#allocation7 + $0x18] sm:$0xff]
    %v200 = vld [vmem:[%s4] sm:$0x1]
    %v202 = vlaneseq
    %v203 = vshrl.u32 %v202, 7
    %v204 = vsub.s32 0, %v203
    %v205 = vrot.slane %v200, %v204
    %v208 = vsel %vm108, %v194, 0
    %v211 = vsel %vm108, %v195, 0
    %213 = vmatprep.subr.mxu0 0.0
    %214 = vmatpush1.msra.mxu0 0.0
    %215 = vmatprep.subr.mxu0 0.0
    %216 = vmatpush1.msra.mxu0 0.0
    %217 = vmatprep.subr.mxu0 0.0
    %218 = vmatpush1.msra.mxu0 0.0
    %219 = vmatprep.subr.mxu0 0.0
    %220 = vmatpush1.msra.mxu0 0.0
    %221 = vmatprep.subr.mxu0 0.0
    %222 = vmatpush1.msra.mxu0 0.0
    %223 = vmatprep.subr.mxu0 0.0
    %224 = vmatpush1.msra.mxu0 0.0
    %225 = vmatprep.subr.mxu0 0.0
    %226 = vmatpush1.msra.mxu0 0.0
    %227 = vmatprep.subr.mxu0 0.0
    %228 = vmatpush1.msra.mxu0 0.0
    %229 = vmatprep.subr.mxu0 0.0
    %230 = vmatpush1.msra.mxu0 0.0
    %231 = vmatprep.subr.mxu0 0.0
    %232 = vmatpush1.msra.mxu0 0.0
    %233 = vmatprep.subr.mxu0 0.0
    %234 = vmatpush1.msra.mxu0 0.0
    %235 = vmatprep.subr.mxu0 0.0
    %236 = vmatpush1.msra.mxu0 0.0
    %237 = vmatprep.subr.mxu0 0.0
    %238 = vmatpush1.msra.mxu0 %v199
    %239 = vmatprep.subr.mxu0 0.0
    %240 = vmatpush1.msra.mxu0 %v198
    %241 = vmatprep.subr.mxu0 0.0
    %242 = vmatpush1.msra.mxu0 %v197
    %243 = vmatprep.subr.mxu0 0.0
    %244 = vmatpush1.msra.mxu0 %v196
    %245 = vmatprep.subr.mxu0 0.0
    %246 = vmatpush2.msra.mxu0 0.0
    %247 = vmatprep.subr.mxu0 0.0
    %248 = vmatpush2.msra.mxu0 0.0
    %249 = vmatprep.subr.mxu0 0.0
    %250 = vmatpush2.msra.mxu0 0.0
    %251 = vmatprep.subr.mxu0 0.0
    %252 = vmatpush2.msra.mxu0 0.0
    %253 = vmatprep.subr.mxu0 0.0
    %254 = vmatpush2.msra.mxu0 0.0
    %255 = vmatprep.subr.mxu0 0.0
    %256 = vmatpush2.msra.mxu0 0.0
    %257 = vmatprep.subr.mxu0 0.0
    %258 = vmatpush2.msra.mxu0 0.0
    %259 = vmatprep.subr.mxu0 0.0
    %260 = vmatpush2.msra.mxu0 0.0
    %261 = vmatprep.subr.mxu0 0.0
    %262 = vmatpush2.msra.mxu0 0.0
    %263 = vmatprep.subr.mxu0 0.0
    %264 = vmatpush2.msra.mxu0 0.0
    %265 = vmatprep.subr.mxu0 0.0
    %266 = vmatpush2.msra.mxu0 0.0
    %267 = vmatprep.subr.mxu0 0.0
    %268 = vmatpush2.msra.mxu0 0.0
    %269 = vmatprep.subr.mxu0 0.0
    %270 = vmatpush2.msra.mxu0 0.0
    %271 = vmatprep.subr.mxu0 0.0
    %272 = vmatpush2.msra.mxu0 0.0
    %273 = vmatprep.subr.mxu0 0.0
    %274 = vmatpush2.msra.mxu0 0.0
    %275 = vmatprep.subr.mxu0 0.0
    %276 = vmatpush2.msra.mxu0 0.0
    %277 = vmatprep.mubr.f32.mxu0 0.0
    %278 = vmatmul.mubr.f32.gmra.mxu0 %v208
    %v279 = vpop.f32.mrf.mxu0
    %v280 = vadd.f32 %v205, %v279
    %v281 = vpop.f32.mrf.mxu0
    %282 = vmatprep.mubr.f32.mxu0 0.0
    %283 = vmatmul.mubr.f32.gmra.mxu0 %v211
    %v284 = vpop.f32.mrf.mxu0
    %v285 = vadd.f32 %v205, %v284
    %v286 = vpop.f32.mrf.mxu0
    %287 = vdwg.mxu0
    %v288 = vmax.f32 %v280, 0.0
    %v289 = vmax.f32 %v285, 0.0
    %v290 = vld [vmem:[#allocation10] sm:$0xff]
    %v291 = vld [vmem:[#allocation10 + $0x8] sm:$0xff]
    %v292 = vmul.f32 %v288, %v290
    %v293 = vmul.f32 %v289, %v291
    %294 = vst.msk [vmem:[#allocation11] sm:$0xff] %vm108, %v292
    %295 = vst.msk [vmem:[#allocation11 + $0x8] sm:$0xff] %vm108, %v293
    // Predicated region
    $region50: #{tpu_custom_call.1} parent=1 // pred_check
      _
    $region51: #{tpu_custom_call.1} parent=1 // pred_check_branch
      %297 = sbr.rel (0) target = $region53
    $region52: #{tpu_custom_call.1} parent=1 // pred_region
      %s299 = ssub.s32 256, 256
      %300 = vsyncadd [#allocation4], %s299
      %s301 = sshll.u32 [#allocation11], 4
      %s302 = int_to_ptr.vmem [resolvable:$true] %s301
      %307 = dma.vmem_to_hbm [thread:$0]  %s302, 256, %s7, [#allocation4], 128, 128, 8
    $region53: #{tpu_custom_call.1} parent=1 // pred_fallthru
      _
    // Predicated region
    $region54: #{tpu_custom_call.1} parent=1 // pred_check
      _
    $region55: #{tpu_custom_call.1} parent=1 // pred_check_branch
      %309 = sbr.rel (0) target = $region57
    $region56: #{tpu_custom_call.1} parent=1 // pred_region
      %310 = dma.done [#allocation4], 256
    $region57: #{tpu_custom_call.1} parent=1 // pred_fallthru
      _
    %311 = vsyncpa [#allocation3], 1
    %312 = vsyncpa [#allocation6], 1
    %313 = vsyncpa [#allocation9], 1
    %314 = vsyncpa [#allocation4], 1

</llo_original>
